<compile_context>
chip_gen: v7x
topology: tpu7x:2x2x1
jax: 0.10.0
libtpu: 0.0.40
codegen_flags: <defaults>
</compile_context>

<pallas_src>
import functools

import jax
import jax.numpy as jnp
from jax.experimental import pallas as pl
from jax.experimental.pallas import tpu as pltpu


def dense_decoder_kernel(x_ref,
                         w1_ref, b1_ref,
                         w2_ref, b2_ref,
                         w3_ref, b3_ref,
                         w4_ref, b4_ref,
                         out_ref):
    """One (TB, feat_dims) batch tile: 4 MXU matmuls with fused bias+ReLU."""
    x = x_ref[...].astype(jnp.bfloat16)                      # (TB, feat_dims)

    # fc1 (+ folded bn0) + relu
    h = jnp.dot(x, w1_ref[...], preferred_element_type=jnp.float32) + b1_ref[...]
    h = jnp.maximum(h, 0.0).astype(jnp.bfloat16)

    # fc2 (+ folded bn1) + relu
    h = jnp.dot(h, w2_ref[...], preferred_element_type=jnp.float32) + b2_ref[...]
    h = jnp.maximum(h, 0.0).astype(jnp.bfloat16)

    # fc3 (+ folded bn2) + relu
    h = jnp.dot(h, w3_ref[...], preferred_element_type=jnp.float32) + b3_ref[...]
    h = jnp.maximum(h, 0.0).astype(jnp.bfloat16)

    # fc4 (no BN / activation)
    h = jnp.dot(h, w4_ref[...], preferred_element_type=jnp.float32) + b4_ref[...]
    out_ref[...] = h.astype(out_ref.dtype)


def _round_up(x, n):
    return ((x + n - 1) // n) * n


def init_params(key, feat_dims, num_points, eps=1e-5):
    """Synthetic params matching the PyTorch module, with BN folded in.

    For layers 1-3 (followed by BatchNorm1d in eval mode):
        scale = gamma * rsqrt(running_var + eps)
        W'    = W * scale          (broadcast over output features)
        b'    = b * scale + (beta - running_mean * scale)
    Weights are stored bf16 (native MXU dtype), biases stay f32.
    Weights are stored as (in, out) so the kernel computes x @ W (== torch's
    x @ W.T with W stored (out, in)).
    """
    m = num_points
    dims = [(feat_dims, 1024), (1024, m // 2), (m // 2, m), (m, 2 * m)]
    keys = jax.random.split(key, 4 * 2 + 3 * 4)
    ki = iter(range(len(keys)))

    params = {}
    for li, (din, dout) in enumerate(dims, start=1):
        w = 0.05 * jax.random.normal(keys[next(ki)], (din, dout), dtype=jnp.float32)
        b = 0.05 * jax.random.normal(keys[next(ki)], (1, dout), dtype=jnp.float32)

        if li <= 3:  # fold BatchNorm1d (eval mode) into this layer
            c = dout
            gamma = 1.0 + 0.1 * jax.random.normal(keys[next(ki)], (c,))
            beta = 0.1 * jax.random.normal(keys[next(ki)], (c,))
            rmean = 0.1 * jax.random.normal(keys[next(ki)], (c,))
            rvar = jnp.abs(1.0 + 0.1 * jax.random.normal(keys[next(ki)], (c,)))
            scale = gamma * jax.lax.rsqrt(rvar + eps)
            shift = beta - rmean * scale
            w = w * scale[None, :]
            b = b * scale[None, :] + shift[None, :]

        params[f"w{li}"] = w.astype(jnp.bfloat16)
        params[f"b{li}"] = b.astype(jnp.float32)
    return params


def _vmem_bytes_estimate(tb, feat_dims, m):
    """Rough resident footprint: bf16 weights + f32 biases + pipelined act tiles."""
    w_elems = feat_dims * 1024 + 1024 * (m // 2) + (m // 2) * m + m * (2 * m)
    b_elems = 1024 + m // 2 + m + 2 * m
    # double-buffered x / out blocks + intermediate activation temporaries
    act_elems = 2 * tb * (feat_dims + 2 * m) + tb * (1024 + m // 2 + m + 2 * m)
    return 2 * w_elems + 4 * b_elems + 4 * act_elems


@functools.partial(jax.jit, static_argnames=("num_points",))
def dense_decoder_forward(feat, params, *, num_points):
    """feat: (B, 1, feat_dims) -> (B, 2, num_points)."""
    B = feat.shape[0]
    feat_dims = feat.shape[-1]
    m = num_points
    x = feat.reshape(B, feat_dims).astype(jnp.float32)  # == feat.squeeze()

    # Pad batch to a sublane-friendly tile and grid over batch rows.
    TB = min(128, _round_up(B, 8))
    B_pad = _round_up(B, TB)
    if B_pad != B:
        x = jnp.pad(x, ((0, B_pad - B), (0, 0)))
    grid = (B_pad // TB,)

    row_map = lambda i: (i, 0)     # activation / output tiles march over batch
    const_map = lambda i: (0, 0)   # weights & biases stay resident in VMEM

    in_specs = [
        pl.BlockSpec((TB, feat_dims), row_map),
        pl.BlockSpec(params["w1"].shape, const_map),
        pl.BlockSpec(params["b1"].shape, const_map),
        pl.BlockSpec(params["w2"].shape, const_map),
        pl.BlockSpec(params["b2"].shape, const_map),
        pl.BlockSpec(params["w3"].shape, const_map),
        pl.BlockSpec(params["b3"].shape, const_map),
        pl.BlockSpec(params["w4"].shape, const_map),
        pl.BlockSpec(params["b4"].shape, const_map),
    ]
    out_spec = pl.BlockSpec((TB, 2 * m), row_map)

    # Generation-aware VMEM budget: never request the full physical VMEM
    # (64 MiB per TensorCore on v7x).
    try:
        phys_vmem = getattr(pltpu.get_tpu_info(), "vmem_capacity_bytes", 64 << 20)
    except Exception:  # pragma: no cover - conservative fallback
        phys_vmem = 64 << 20
    need = _vmem_bytes_estimate(TB, feat_dims, m)
    vmem_limit = int(min(max(need + (8 << 20), 32 << 20), phys_vmem * 3 // 4))
    # NOTE: for very large num_points (m >= ~2048) w4 (m, 2m) dominates VMEM;
    # it should then additionally be tiled over its output columns with a
    # second grid axis.  Not needed at the sizes exercised here.

    out = pl.pallas_call(
        dense_decoder_kernel,
        out_shape=jax.ShapeDtypeStruct((B_pad, 2 * m), jnp.float32),
        grid=grid,
        in_specs=in_specs,
        out_specs=out_spec,
        compiler_params=pltpu.CompilerParams(
            dimension_semantics=("parallel",),
            vmem_limit_bytes=vmem_limit,
        ),
    )(
        x,
        params["w1"], params["b1"],
        params["w2"], params["b2"],
        params["w3"], params["b3"],
        params["w4"], params["b4"],
    )

    return out[:B].reshape(B, 2, m)


if __name__ == "__main__":
    B, feat_dims, num_points = 2, 32, 128

    key = jax.random.PRNGKey(0)
    k_feat, k_params = jax.random.split(key)

    feat = jax.random.normal(k_feat, (B, 1, feat_dims), dtype=jnp.float32)
    params = init_params(k_params, feat_dims, num_points)

    pts = dense_decoder_forward(feat, params, num_points=num_points)
    jax.block_until_ready(pts)

    assert pts.shape == (B, 2, num_points), pts.shape
    assert bool(jnp.all(jnp.isfinite(pts)))
    print("KERNEL_OK")
</pallas_src>

<mosaic_0001>
module attributes {stable_mosaic.version = 11 : i64} {
  func.func @dense_decoder_kernel(%arg0: i32, %arg1: memref<8x32xf32, #tpu.memory_space<vmem>>, %arg2: memref<32x1024xbf16, #tpu.memory_space<vmem>>, %arg3: memref<1x1024xf32, #tpu.memory_space<vmem>>, %arg4: memref<1024x64xbf16, #tpu.memory_space<vmem>>, %arg5: memref<1x64xf32, #tpu.memory_space<vmem>>, %arg6: memref<64x128xbf16, #tpu.memory_space<vmem>>, %arg7: memref<1x128xf32, #tpu.memory_space<vmem>>, %arg8: memref<128x256xbf16, #tpu.memory_space<vmem>>, %arg9: memref<1x256xf32, #tpu.memory_space<vmem>>, %arg10: memref<8x256xf32, #tpu.memory_space<vmem>>) attributes {dimension_semantics = [#tpu.dimension_semantics<parallel>], iteration_bounds = array<i64: 1>, scalar_prefetch = 0 : i64, scratch_operands = 0 : i64, tpu.core_type = #tpu.core_type<tc>, window_params = [{transform_indices = @transform_0, window_bounds = array<i64: 8, 32>}, {pipeline_mode = #tpu.pipeline_mode<synchronous>, transform_indices = @transform_1, window_bounds = array<i64: 32, 1024>}, {pipeline_mode = #tpu.pipeline_mode<synchronous>, transform_indices = @transform_2, window_bounds = array<i64: 1, 1024>}, {pipeline_mode = #tpu.pipeline_mode<synchronous>, transform_indices = @transform_3, window_bounds = array<i64: 1024, 64>}, {pipeline_mode = #tpu.pipeline_mode<synchronous>, transform_indices = @transform_4, window_bounds = array<i64: 1, 64>}, {pipeline_mode = #tpu.pipeline_mode<synchronous>, transform_indices = @transform_5, window_bounds = array<i64: 64, 128>}, {pipeline_mode = #tpu.pipeline_mode<synchronous>, transform_indices = @transform_6, window_bounds = array<i64: 1, 128>}, {pipeline_mode = #tpu.pipeline_mode<synchronous>, transform_indices = @transform_7, window_bounds = array<i64: 128, 256>}, {pipeline_mode = #tpu.pipeline_mode<synchronous>, transform_indices = @transform_8, window_bounds = array<i64: 1, 256>}, {transform_indices = @transform_9, window_bounds = array<i64: 8, 256>}]} {
    %c0 = arith.constant 0 : index
    %c0_0 = arith.constant 0 : index
    %0 = vector.load %arg1[%c0, %c0_0] : memref<8x32xf32, #tpu.memory_space<vmem>>, vector<8x32xf32>
    %1 = arith.truncf %0 : vector<8x32xf32> to vector<8x32xbf16>
    %c0_1 = arith.constant 0 : index
    %c0_2 = arith.constant 0 : index
    %2 = vector.load %arg2[%c0_1, %c0_2] : memref<32x1024xbf16, #tpu.memory_space<vmem>>, vector<32x1024xbf16>
    %cst = arith.constant dense<0.000000e+00> : vector<8x1024xf32>
    %3 = tpu.matmul %1, %2, %cst {dimension_numbers = #tpu.dot_dimension_numbers<[1], [0], [0], [1], [0, 0, 1, 1], [], []>} : vector<8x32xbf16>, vector<32x1024xbf16>, vector<8x1024xf32> -> vector<8x1024xf32>
    %c0_3 = arith.constant 0 : index
    %c0_4 = arith.constant 0 : index
    %4 = vector.load %arg3[%c0_3, %c0_4] : memref<1x1024xf32, #tpu.memory_space<vmem>>, vector<1x1024xf32>
    %5 = vector.broadcast %4 : vector<1x1024xf32> to vector<8x1024xf32>
    %6 = arith.addf %3, %5 : vector<8x1024xf32>
    %cst_5 = arith.constant 0.000000e+00 : f32
    %7 = vector.broadcast %cst_5 : f32 to vector<8x1024xf32>
    %8 = arith.maximumf %6, %7 : vector<8x1024xf32>
    %9 = arith.truncf %8 : vector<8x1024xf32> to vector<8x1024xbf16>
    %c0_6 = arith.constant 0 : index
    %c0_7 = arith.constant 0 : index
    %10 = vector.load %arg4[%c0_6, %c0_7] : memref<1024x64xbf16, #tpu.memory_space<vmem>>, vector<1024x64xbf16>
    %cst_8 = arith.constant dense<0.000000e+00> : vector<8x64xf32>
    %11 = tpu.matmul %9, %10, %cst_8 {dimension_numbers = #tpu.dot_dimension_numbers<[1], [0], [0], [1], [0, 0, 1, 1], [], []>} : vector<8x1024xbf16>, vector<1024x64xbf16>, vector<8x64xf32> -> vector<8x64xf32>
    %c0_9 = arith.constant 0 : index
    %c0_10 = arith.constant 0 : index
    %12 = vector.load %arg5[%c0_9, %c0_10] : memref<1x64xf32, #tpu.memory_space<vmem>>, vector<1x64xf32>
    %13 = vector.broadcast %12 : vector<1x64xf32> to vector<8x64xf32>
    %14 = arith.addf %11, %13 : vector<8x64xf32>
    %cst_11 = arith.constant 0.000000e+00 : f32
    %15 = vector.broadcast %cst_11 : f32 to vector<8x64xf32>
    %16 = arith.maximumf %14, %15 : vector<8x64xf32>
    %17 = arith.truncf %16 : vector<8x64xf32> to vector<8x64xbf16>
    %c0_12 = arith.constant 0 : index
    %c0_13 = arith.constant 0 : index
    %18 = vector.load %arg6[%c0_12, %c0_13] : memref<64x128xbf16, #tpu.memory_space<vmem>>, vector<64x128xbf16>
    %cst_14 = arith.constant dense<0.000000e+00> : vector<8x128xf32>
    %19 = tpu.matmul %17, %18, %cst_14 {dimension_numbers = #tpu.dot_dimension_numbers<[1], [0], [0], [1], [0, 0, 1, 1], [], []>} : vector<8x64xbf16>, vector<64x128xbf16>, vector<8x128xf32> -> vector<8x128xf32>
    %c0_15 = arith.constant 0 : index
    %c0_16 = arith.constant 0 : index
    %20 = vector.load %arg7[%c0_15, %c0_16] : memref<1x128xf32, #tpu.memory_space<vmem>>, vector<1x128xf32>
    %21 = vector.broadcast %20 : vector<1x128xf32> to vector<8x128xf32>
    %22 = arith.addf %19, %21 : vector<8x128xf32>
    %cst_17 = arith.constant 0.000000e+00 : f32
    %23 = vector.broadcast %cst_17 : f32 to vector<8x128xf32>
    %24 = arith.maximumf %22, %23 : vector<8x128xf32>
    %25 = arith.truncf %24 : vector<8x128xf32> to vector<8x128xbf16>
    %c0_18 = arith.constant 0 : index
    %c0_19 = arith.constant 0 : index
    %26 = vector.load %arg8[%c0_18, %c0_19] : memref<128x256xbf16, #tpu.memory_space<vmem>>, vector<128x256xbf16>
    %cst_20 = arith.constant dense<0.000000e+00> : vector<8x256xf32>
    %27 = tpu.matmul %25, %26, %cst_20 {dimension_numbers = #tpu.dot_dimension_numbers<[1], [0], [0], [1], [0, 0, 1, 1], [], []>} : vector<8x128xbf16>, vector<128x256xbf16>, vector<8x256xf32> -> vector<8x256xf32>
    %c0_21 = arith.constant 0 : index
    %c0_22 = arith.constant 0 : index
    %28 = vector.load %arg9[%c0_21, %c0_22] : memref<1x256xf32, #tpu.memory_space<vmem>>, vector<1x256xf32>
    %29 = vector.broadcast %28 : vector<1x256xf32> to vector<8x256xf32>
    %30 = arith.addf %27, %29 : vector<8x256xf32>
    %c0_23 = arith.constant 0 : index
    %c0_24 = arith.constant 0 : index
    %31 = vector.load %arg10[%c0_23, %c0_24] : memref<8x256xf32, #tpu.memory_space<vmem>>, vector<8x256xf32>
    tpu.vector_store %arg10[%c0_23, %c0_24], %30 {strides = array<i32>} : memref<8x256xf32, #tpu.memory_space<vmem>>, vector<8x256xf32>,
    return
  }
  func.func @transform_0(%arg0: i32) -> (i32, i32) {
    %c0_i32 = arith.constant 0 : i32
    %c0_i32_0 = arith.constant 0 : i32
    return %arg0, %c0_i32 : i32, i32
  }
  func.func @transform_1(%arg0: i32) -> (i32, i32) {
    %c0_i32 = arith.constant 0 : i32
    %c0_i32_0 = arith.constant 0 : i32
    %c0_i32_1 = arith.constant 0 : i32
    return %c0_i32, %c0_i32_0 : i32, i32
  }
  func.func @transform_2(%arg0: i32) -> (i32, i32) {
    %c0_i32 = arith.constant 0 : i32
    %c0_i32_0 = arith.constant 0 : i32
    %c0_i32_1 = arith.constant 0 : i32
    return %c0_i32, %c0_i32_0 : i32, i32
  }
  func.func @transform_3(%arg0: i32) -> (i32, i32) {
    %c0_i32 = arith.constant 0 : i32
    %c0_i32_0 = arith.constant 0 : i32
    %c0_i32_1 = arith.constant 0 : i32
    return %c0_i32, %c0_i32_0 : i32, i32
  }
  func.func @transform_4(%arg0: i32) -> (i32, i32) {
    %c0_i32 = arith.constant 0 : i32
    %c0_i32_0 = arith.constant 0 : i32
    %c0_i32_1 = arith.constant 0 : i32
    return %c0_i32, %c0_i32_0 : i32, i32
  }
  func.func @transform_5(%arg0: i32) -> (i32, i32) {
    %c0_i32 = arith.constant 0 : i32
    %c0_i32_0 = arith.constant 0 : i32
    %c0_i32_1 = arith.constant 0 : i32
    return %c0_i32, %c0_i32_0 : i32, i32
  }
  func.func @transform_6(%arg0: i32) -> (i32, i32) {
    %c0_i32 = arith.constant 0 : i32
    %c0_i32_0 = arith.constant 0 : i32
    %c0_i32_1 = arith.constant 0 : i32
    return %c0_i32, %c0_i32_0 : i32, i32
  }
  func.func @transform_7(%arg0: i32) -> (i32, i32) {
    %c0_i32 = arith.constant 0 : i32
    %c0_i32_0 = arith.constant 0 : i32
    %c0_i32_1 = arith.constant 0 : i32
    return %c0_i32, %c0_i32_0 : i32, i32
  }
  func.func @transform_8(%arg0: i32) -> (i32, i32) {
    %c0_i32 = arith.constant 0 : i32
    %c0_i32_0 = arith.constant 0 : i32
    %c0_i32_1 = arith.constant 0 : i32
    return %c0_i32, %c0_i32_0 : i32, i32
  }
  func.func @transform_9(%arg0: i32) -> (i32, i32) {
    %c0_i32 = arith.constant 0 : i32
    %c0_i32_0 = arith.constant 0 : i32
    return %arg0, %c0_i32 : i32, i32
  }
}

</mosaic_0001>

<llo_original>
// kernel: dense_decoder_forward.1
$region0: #{dense_decoder_forward.1}
  #allocation0 [shape = 'u32[]', space=smem, size = 0x4, offset = 0x4, fixed_abs, tag = 'smem constant byte address 0x4 - core index']
  #allocation1 [shape = 'u32[144,128]{1,0:T(1,128)}', space=vmem, size = 0x12000, scoped, tag = 'internal scratch']
  %s0 = inlined_call_operand.vmem [shape: f32[8,32], index: 0, kind: input, shape index: {}]
  %s1 = inlined_call_operand.vmem [shape: bf16[32,1024], index: 1, kind: input, shape index: {}]
  %s2 = inlined_call_operand.vmem [shape: f32[1,1024], index: 2, kind: input, shape index: {}]
  %s3 = inlined_call_operand.vmem [shape: bf16[1024,64], index: 3, kind: input, shape index: {}]
  %s4 = inlined_call_operand.vmem [shape: f32[1,64], index: 4, kind: input, shape index: {}]
  %s5 = inlined_call_operand.vmem [shape: bf16[64,128], index: 5, kind: input, shape index: {}]
  %s6 = inlined_call_operand.vmem [shape: f32[1,128], index: 6, kind: input, shape index: {}]
  %s7 = inlined_call_operand.vmem [shape: bf16[128,256], index: 7, kind: input, shape index: {}]
  %s8 = inlined_call_operand.vmem [shape: f32[1,256], index: 8, kind: input, shape index: {}]
  %s9 = inlined_call_operand.vmem [shape: f32[8,256], index: 9, kind: output, shape index: {}]
  %s10 = sld [smem:[#allocation0]]
  $region46: #{dense_decoder_forward.1} parent=0
    _
  %s12 = ssub.s32 1, %s10
  %s13 = scalar_select 0, %s12, %s10
  // Predicated region
  $region2: #{dense_decoder_forward.1} parent=0 // pred_check
    _
  $region3: #{dense_decoder_forward.1} parent=0 // pred_check_branch
    %15 = sbr.rel (0) target = $region5
  $region4: #{dense_decoder_forward.1} parent=0 // pred_region
    _
  $region5: #{dense_decoder_forward.1} parent=0 // pred_fallthru
    _
  // Predicated region
  $region6: #{dense_decoder_forward.1} parent=0 // pred_check
    _
  $region7: #{dense_decoder_forward.1} parent=0 // pred_check_branch
    %17 = sbr.rel (0) target = $region9
  $region8: #{dense_decoder_forward.1} parent=0 // pred_region
    _
  $region9: #{dense_decoder_forward.1} parent=0 // pred_fallthru
    _
  // Predicated region
  $region10: #{dense_decoder_forward.1} parent=0 // pred_check
    _
  $region11: #{dense_decoder_forward.1} parent=0 // pred_check_branch
    %19 = sbr.rel (0) target = $region13
  $region12: #{dense_decoder_forward.1} parent=0 // pred_region
    _
  $region13: #{dense_decoder_forward.1} parent=0 // pred_fallthru
    _
  // Predicated region
  $region14: #{dense_decoder_forward.1} parent=0 // pred_check
    _
  $region15: #{dense_decoder_forward.1} parent=0 // pred_check_branch
    %21 = sbr.rel (0) target = $region17
  $region16: #{dense_decoder_forward.1} parent=0 // pred_region
    _
  $region17: #{dense_decoder_forward.1} parent=0 // pred_fallthru
    _
  // Predicated region
  $region18: #{dense_decoder_forward.1} parent=0 // pred_check
    _
  $region19: #{dense_decoder_forward.1} parent=0 // pred_check_branch
    %23 = sbr.rel (0) target = $region21
  $region20: #{dense_decoder_forward.1} parent=0 // pred_region
    _
  $region21: #{dense_decoder_forward.1} parent=0 // pred_fallthru
    _
  // Predicated region
  $region22: #{dense_decoder_forward.1} parent=0 // pred_check
    _
  $region23: #{dense_decoder_forward.1} parent=0 // pred_check_branch
    %25 = sbr.rel (0) target = $region25
  $region24: #{dense_decoder_forward.1} parent=0 // pred_region
    _
  $region25: #{dense_decoder_forward.1} parent=0 // pred_fallthru
    _
  // Predicated region
  $region26: #{dense_decoder_forward.1} parent=0 // pred_check
    _
  $region27: #{dense_decoder_forward.1} parent=0 // pred_check_branch
    %27 = sbr.rel (0) target = $region29
  $region28: #{dense_decoder_forward.1} parent=0 // pred_region
    _
  $region29: #{dense_decoder_forward.1} parent=0 // pred_fallthru
    _
  // Predicated region
  $region30: #{dense_decoder_forward.1} parent=0 // pred_check
    _
  $region31: #{dense_decoder_forward.1} parent=0 // pred_check_branch
    %29 = sbr.rel (0) target = $region33
  $region32: #{dense_decoder_forward.1} parent=0 // pred_region
    _
  $region33: #{dense_decoder_forward.1} parent=0 // pred_fallthru
    _
  // Predicated region
  $region34: #{dense_decoder_forward.1} parent=0 // pred_check
    _
  $region35: #{dense_decoder_forward.1} parent=0 // pred_check_branch
    %31 = sbr.rel (0) target = $region37
  $region36: #{dense_decoder_forward.1} parent=0 // pred_region
    _
  $region37: #{dense_decoder_forward.1} parent=0 // pred_fallthru
    _
  %v33 = vld [vmem:[%s0] sm:$0xff]
  %v34 = vpack.c.bf16 %v33, %v33
  %v35 = vld [vmem:[%s1] sm:$0xff]
  %v36 = vld [vmem:[%s1 + $0x8] sm:$0xff]
  %v37 = vld [vmem:[%s1 + $0x10] sm:$0xff]
  %v38 = vld [vmem:[%s1 + $0x18] sm:$0xff]
  %v39 = vld [vmem:[%s1 + $0x20] sm:$0xff]
  %v40 = vld [vmem:[%s1 + $0x28] sm:$0xff]
  %v41 = vld [vmem:[%s1 + $0x30] sm:$0xff]
  %v42 = vld [vmem:[%s1 + $0x38] sm:$0xff]
  %v43 = vld [vmem:[%s1 + $0x40] sm:$0xff]
  %v44 = vld [vmem:[%s1 + $0x48] sm:$0xff]
  %v45 = vld [vmem:[%s1 + $0x50] sm:$0xff]
  %v46 = vld [vmem:[%s1 + $0x58] sm:$0xff]
  %v47 = vld [vmem:[%s1 + $0x60] sm:$0xff]
  %v48 = vld [vmem:[%s1 + $0x68] sm:$0xff]
  %v49 = vld [vmem:[%s1 + $0x70] sm:$0xff]
  %v50 = vld [vmem:[%s1 + $0x78] sm:$0xff]
  %v51 = vld [vmem:[%s2] sm:$0xff]
  %v53 = vlaneseq
  %v54 = vshrl.u32 %v53, 7
  %v55 = vsub.s32 0, %v54
  %v56 = vrot.slane %v51, %v55
  %v57 = vlaneseq
  %v58 = vshrl.u32 %v57, 7
  %v59 = vsub.s32 1, %v58
  %v60 = vrot.slane %v51, %v59
  %v61 = vlaneseq
  %v62 = vshrl.u32 %v61, 7
  %v63 = vsub.s32 2, %v62
  %v64 = vrot.slane %v51, %v63
  %v65 = vlaneseq
  %v66 = vshrl.u32 %v65, 7
  %v67 = vsub.s32 3, %v66
  %v68 = vrot.slane %v51, %v67
  %v69 = vlaneseq
  %v70 = vshrl.u32 %v69, 7
  %v71 = vsub.s32 4, %v70
  %v72 = vrot.slane %v51, %v71
  %v73 = vlaneseq
  %v74 = vshrl.u32 %v73, 7
  %v75 = vsub.s32 5, %v74
  %v76 = vrot.slane %v51, %v75
  %v77 = vlaneseq
  %v78 = vshrl.u32 %v77, 7
  %v79 = vsub.s32 6, %v78
  %v80 = vrot.slane %v51, %v79
  %v81 = vlaneseq
  %v82 = vshrl.u32 %v81, 7
  %v83 = vsub.s32 7, %v82
  %v84 = vrot.slane %v51, %v83
  %v109 = vunpack.c.l.b16 %v35
  %v110 = vunpack.c.h.b16 %v35
  %v111 = vunpack.c.l.b16 %v36
  %v112 = vunpack.c.h.b16 %v36
  %v113 = vunpack.c.l.b16 %v37
  %v114 = vunpack.c.h.b16 %v37
  %v115 = vunpack.c.l.b16 %v38
  %v116 = vunpack.c.h.b16 %v38
  %v117 = vunpack.c.l.b16 %v39
  %v118 = vunpack.c.h.b16 %v39
  %v119 = vunpack.c.l.b16 %v40
  %v120 = vunpack.c.h.b16 %v40
  %v121 = vunpack.c.l.b16 %v41
  %v122 = vunpack.c.h.b16 %v41
  %v123 = vunpack.c.l.b16 %v42
  %v124 = vunpack.c.h.b16 %v42
  %v125 = vunpack.c.l.b16 %v43
  %v126 = vunpack.c.h.b16 %v43
  %v127 = vunpack.c.l.b16 %v44
  %v128 = vunpack.c.h.b16 %v44
  %v129 = vunpack.c.l.b16 %v45
  %v130 = vunpack.c.h.b16 %v45
  %v131 = vunpack.c.l.b16 %v46
  %v132 = vunpack.c.h.b16 %v46
  %v133 = vunpack.c.l.b16 %v47
  %v134 = vunpack.c.h.b16 %v47
  %v135 = vunpack.c.l.b16 %v48
  %v136 = vunpack.c.h.b16 %v48
  %v137 = vunpack.c.l.b16 %v49
  %v138 = vunpack.c.h.b16 %v49
  %v139 = vunpack.c.l.b16 %v50
  %v140 = vunpack.c.h.b16 %v50
  %v141 = vpack.c.b16 %v117, %v109
  %v142 = vpack.c.b16 %v118, %v110
  %v143 = vpack.c.b16 %v119, %v111
  %v144 = vpack.c.b16 %v120, %v112
  %v145 = vpack.c.b16 %v121, %v113
  %v146 = vpack.c.b16 %v122, %v114
  %v147 = vpack.c.b16 %v123, %v115
  %v148 = vpack.c.b16 %v124, %v116
  %v149 = vpack.c.b16 %v133, %v125
  %v150 = vpack.c.b16 %v134, %v126
  %v151 = vpack.c.b16 %v135, %v127
  %v152 = vpack.c.b16 %v136, %v128
  %v153 = vpack.c.b16 %v137, %v129
  %v154 = vpack.c.b16 %v138, %v130
  %v155 = vpack.c.b16 %v139, %v131
  %v156 = vpack.c.b16 %v140, %v132
  %vm173 = vcmask 261120
  %v175 = vsel %vm173, %v34, 0
  %177 = vmatprep.subr.bf16.mxu0 %v142
  %178 = vmatpush1.bf16.msra.mxu0 %v141
  %179 = vmatprep.subr.bf16.mxu0 %v150
  %180 = vmatpush1.bf16.msra.mxu0 %v149
  %181 = vmatprep.subr.bf16.mxu0 0
  %182 = vmatpush1.bf16.msra.mxu0 0
  %183 = vmatprep.subr.bf16.mxu0 0
  %184 = vmatpush1.bf16.msra.mxu0 0
  %185 = vmatprep.subr.bf16.mxu0 0
  %186 = vmatpush1.bf16.msra.mxu0 0
  %187 = vmatprep.subr.bf16.mxu0 0
  %188 = vmatpush1.bf16.msra.mxu0 0
  %189 = vmatprep.subr.bf16.mxu0 0
  %190 = vmatpush1.bf16.msra.mxu0 0
  %191 = vmatprep.subr.bf16.mxu0 0
  %192 = vmatpush1.bf16.msra.mxu0 0
  %193 = vmatprep.subr.bf16.mxu0 0
  %194 = vmatpush1.bf16.msra.mxu0 0
  %195 = vmatprep.subr.bf16.mxu0 0
  %196 = vmatpush1.bf16.msra.mxu0 0
  %197 = vmatprep.subr.bf16.mxu0 0
  %198 = vmatpush1.bf16.msra.mxu0 0
  %199 = vmatprep.subr.bf16.mxu0 0
  %200 = vmatpush1.bf16.msra.mxu0 0
  %201 = vmatprep.subr.bf16.mxu0 0
  %202 = vmatpush1.bf16.msra.mxu0 0
  %203 = vmatprep.subr.bf16.mxu0 0
  %204 = vmatpush1.bf16.msra.mxu0 0
  %205 = vmatprep.subr.bf16.mxu0 0
  %206 = vmatpush1.bf16.msra.mxu0 0
  %207 = vmatprep.subr.bf16.mxu0 0
  %208 = vmatpush1.bf16.msra.mxu0 0
  %209 = vmatprep.mubr.bf16.mxu0 0
  %210 = vmatmul.mubr.bf16.gmra.mrb[0].mxu0 %v175
  %v211 = vpop.f32.mrb[0].mxu0
  %v212 = vadd.f32 %v56, %v211
  %v213 = vpop.f32.mrb[0].mxu0
  %v214 = vadd.f32 %v60, %v213
  %v215 = vpop.f32.mrb[0].mxu0
  %v216 = vpop.f32.mrb[0].mxu0
  %217 = vdwg.mxu0
  %218 = vmatprep.subr.bf16.mxu0 %v144
  %219 = vmatpush1.bf16.msra.mxu0 %v143
  %220 = vmatprep.subr.bf16.mxu0 %v152
  %221 = vmatpush1.bf16.msra.mxu0 %v151
  %222 = vmatprep.subr.bf16.mxu0 0
  %223 = vmatpush1.bf16.msra.mxu0 0
  %224 = vmatprep.subr.bf16.mxu0 0
  %225 = vmatpush1.bf16.msra.mxu0 0
  %226 = vmatprep.subr.bf16.mxu0 0
  %227 = vmatpush1.bf16.msra.mxu0 0
  %228 = vmatprep.subr.bf16.mxu0 0
  %229 = vmatpush1.bf16.msra.mxu0 0
  %230 = vmatprep.subr.bf16.mxu0 0
  %231 = vmatpush1.bf16.msra.mxu0 0
  %232 = vmatprep.subr.bf16.mxu0 0
  %233 = vmatpush1.bf16.msra.mxu0 0
  %234 = vmatprep.subr.bf16.mxu0 0
  %235 = vmatpush1.bf16.msra.mxu0 0
  %236 = vmatprep.subr.bf16.mxu0 0
  %237 = vmatpush1.bf16.msra.mxu0 0
  %238 = vmatprep.subr.bf16.mxu0 0
  %239 = vmatpush1.bf16.msra.mxu0 0
  %240 = vmatprep.subr.bf16.mxu0 0
  %241 = vmatpush1.bf16.msra.mxu0 0
  %242 = vmatprep.subr.bf16.mxu0 0
  %243 = vmatpush1.bf16.msra.mxu0 0
  %244 = vmatprep.subr.bf16.mxu0 0
  %245 = vmatpush1.bf16.msra.mxu0 0
  %246 = vmatprep.subr.bf16.mxu0 0
  %247 = vmatpush1.bf16.msra.mxu0 0
  %248 = vmatprep.subr.bf16.mxu0 0
  %249 = vmatpush1.bf16.msra.mxu0 0
  %250 = vmatprep.mubr.bf16.mxu0 0
  %251 = vmatmul.mubr.bf16.gmra.mrb[0].mxu0 %v175
  %v252 = vpop.f32.mrb[0].mxu0
  %v253 = vadd.f32 %v64, %v252
  %v254 = vpop.f32.mrb[0].mxu0
  %v255 = vadd.f32 %v68, %v254
  %v256 = vpop.f32.mrb[0].mxu0
  %v257 = vpop.f32.mrb[0].mxu0
  %258 = vdwg.mxu0
  %259 = vmatprep.subr.bf16.mxu0 %v146
  %260 = vmatpush1.bf16.msra.mxu0 %v145
  %261 = vmatprep.subr.bf16.mxu0 %v154
  %262 = vmatpush1.bf16.msra.mxu0 %v153
  %263 = vmatprep.subr.bf16.mxu0 0
  %264 = vmatpush1.bf16.msra.mxu0 0
  %265 = vmatprep.subr.bf16.mxu0 0
  %266 = vmatpush1.bf16.msra.mxu0 0
  %267 = vmatprep.subr.bf16.mxu0 0
  %268 = vmatpush1.bf16.msra.mxu0 0
  %269 = vmatprep.subr.bf16.mxu0 0
  %270 = vmatpush1.bf16.msra.mxu0 0
  %271 = vmatprep.subr.bf16.mxu0 0
  %272 = vmatpush1.bf16.msra.mxu0 0
  %273 = vmatprep.subr.bf16.mxu0 0
  %274 = vmatpush1.bf16.msra.mxu0 0
  %275 = vmatprep.subr.bf16.mxu0 0
  %276 = vmatpush1.bf16.msra.mxu0 0
  %277 = vmatprep.subr.bf16.mxu0 0
  %278 = vmatpush1.bf16.msra.mxu0 0
  %279 = vmatprep.subr.bf16.mxu0 0
  %280 = vmatpush1.bf16.msra.mxu0 0
  %281 = vmatprep.subr.bf16.mxu0 0
  %282 = vmatpush1.bf16.msra.mxu0 0
  %283 = vmatprep.subr.bf16.mxu0 0
  %284 = vmatpush1.bf16.msra.mxu0 0
  %285 = vmatprep.subr.bf16.mxu0 0
  %286 = vmatpush1.bf16.msra.mxu0 0
  %287 = vmatprep.subr.bf16.mxu0 0
  %288 = vmatpush1.bf16.msra.mxu0 0
  %289 = vmatprep.subr.bf16.mxu0 0
  %290 = vmatpush1.bf16.msra.mxu0 0
  %291 = vmatprep.mubr.bf16.mxu0 0
  %292 = vmatmul.mubr.bf16.gmra.mrb[0].mxu0 %v175
  %v293 = vpop.f32.mrb[0].mxu0
  %v294 = vadd.f32 %v72, %v293
  %v295 = vpop.f32.mrb[0].mxu0
  %v296 = vadd.f32 %v76, %v295
  %v297 = vpop.f32.mrb[0].mxu0
  %v298 = vpop.f32.mrb[0].mxu0
  %299 = vdwg.mxu0
  %300 = vmatprep.subr.bf16.mxu0 %v148
  %301 = vmatpush1.bf16.msra.mxu0 %v147
  %302 = vmatprep.subr.bf16.mxu0 %v156
  %303 = vmatpush1.bf16.msra.mxu0 %v155
  %304 = vmatprep.subr.bf16.mxu0 0
  %305 = vmatpush1.bf16.msra.mxu0 0
  %306 = vmatprep.subr.bf16.mxu0 0
  %307 = vmatpush1.bf16.msra.mxu0 0
  %308 = vmatprep.subr.bf16.mxu0 0
  %309 = vmatpush1.bf16.msra.mxu0 0
  %310 = vmatprep.subr.bf16.mxu0 0
  %311 = vmatpush1.bf16.msra.mxu0 0
  %312 = vmatprep.subr.bf16.mxu0 0
  %313 = vmatpush1.bf16.msra.mxu0 0
  %314 = vmatprep.subr.bf16.mxu0 0
  %315 = vmatpush1.bf16.msra.mxu0 0
  %316 = vmatprep.subr.bf16.mxu0 0
  %317 = vmatpush1.bf16.msra.mxu0 0
  %318 = vmatprep.subr.bf16.mxu0 0
  %319 = vmatpush1.bf16.msra.mxu0 0
  %320 = vmatprep.subr.bf16.mxu0 0
  %321 = vmatpush1.bf16.msra.mxu0 0
  %322 = vmatprep.subr.bf16.mxu0 0
  %323 = vmatpush1.bf16.msra.mxu0 0
  %324 = vmatprep.subr.bf16.mxu0 0
  %325 = vmatpush1.bf16.msra.mxu0 0
  %326 = vmatprep.subr.bf16.mxu0 0
  %327 = vmatpush1.bf16.msra.mxu0 0
  %328 = vmatprep.subr.bf16.mxu0 0
  %329 = vmatpush1.bf16.msra.mxu0 0
  %330 = vmatprep.subr.bf16.mxu0 0
  %331 = vmatpush1.bf16.msra.mxu0 0
  %332 = vmatprep.mubr.bf16.mxu0 0
  %333 = vmatmul.mubr.bf16.gmra.mrb[0].mxu0 %v175
  %v334 = vpop.f32.mrb[0].mxu0
  %v335 = vadd.f32 %v80, %v334
  %v336 = vpop.f32.mrb[0].mxu0
  %v337 = vadd.f32 %v84, %v336
  %v338 = vpop.f32.mrb[0].mxu0
  %v339 = vpop.f32.mrb[0].mxu0
  %340 = vdwg.mxu0
  %v341 = vmax.f32 %v212, 0.0
  %v342 = vmax.f32 %v214, 0.0
  %v343 = vmax.f32 %v253, 0.0
  %v344 = vmax.f32 %v255, 0.0
  %v345 = vmax.f32 %v294, 0.0
  %v346 = vmax.f32 %v296, 0.0
  %v347 = vmax.f32 %v335, 0.0
  %v348 = vmax.f32 %v337, 0.0
  %v349 = vpack.c.bf16 %v341, %v341
  %v350 = vpack.c.bf16 %v342, %v342
  %v351 = vpack.c.bf16 %v343, %v343
  %v352 = vpack.c.bf16 %v344, %v344
  %v353 = vpack.c.bf16 %v345, %v345
  %v354 = vpack.c.bf16 %v346, %v346
  %v355 = vpack.c.bf16 %v347, %v347
  %v356 = vpack.c.bf16 %v348, %v348
  %v357 = vld [vmem:[%s3] sm:$0xf]
  %v358 = vld [vmem:[%s3 + $0x4] sm:$0xf]
  %v359 = vld [vmem:[%s3 + $0x8] sm:$0xf]
  %v360 = vld [vmem:[%s3 + $0xc] sm:$0xf]
  %v361 = vld [vmem:[%s3 + $0x10] sm:$0xf]
  %v362 = vld [vmem:[%s3 + $0x14] sm:$0xf]
  %v363 = vld [vmem:[%s3 + $0x18] sm:$0xf]
  %v364 = vld [vmem:[%s3 + $0x1c] sm:$0xf]
  %v365 = vld [vmem:[%s3 + $0x20] sm:$0xf]
  %v366 = vld [vmem:[%s3 + $0x24] sm:$0xf]
  %v367 = vld [vmem:[%s3 + $0x28] sm:$0xf]
  %v368 = vld [vmem:[%s3 + $0x2c] sm:$0xf]
  %v369 = vld [vmem:[%s3 + $0x30] sm:$0xf]
  %v370 = vld [vmem:[%s3 + $0x34] sm:$0xf]
  %v371 = vld [vmem:[%s3 + $0x38] sm:$0xf]
  %v372 = vld [vmem:[%s3 + $0x3c] sm:$0xf]
  %v373 = vld [vmem:[%s3 + $0x40] sm:$0xf]
  %v374 = vld [vmem:[%s3 + $0x44] sm:$0xf]
  %v375 = vld [vmem:[%s3 + $0x48] sm:$0xf]
  %v376 = vld [vmem:[%s3 + $0x4c] sm:$0xf]
  %v377 = vld [vmem:[%s3 + $0x50] sm:$0xf]
  %v378 = vld [vmem:[%s3 + $0x54] sm:$0xf]
  %v379 = vld [vmem:[%s3 + $0x58] sm:$0xf]
  %v380 = vld [vmem:[%s3 + $0x5c] sm:$0xf]
  %v381 = vld [vmem:[%s3 + $0x60] sm:$0xf]
  %v382 = vld [vmem:[%s3 + $0x64] sm:$0xf]
  %v383 = vld [vmem:[%s3 + $0x68] sm:$0xf]
  %v384 = vld [vmem:[%s3 + $0x6c] sm:$0xf]
  %v385 = vld [vmem:[%s3 + $0x70] sm:$0xf]
  %v386 = vld [vmem:[%s3 + $0x74] sm:$0xf]
  %v387 = vld [vmem:[%s3 + $0x78] sm:$0xf]
  %v388 = vld [vmem:[%s3 + $0x7c] sm:$0xf]
  %v389 = vld [vmem:[%s3 + $0x80] sm:$0xf]
  %v390 = vld [vmem:[%s3 + $0x84] sm:$0xf]
  %v391 = vld [vmem:[%s3 + $0x88] sm:$0xf]
  %v392 = vld [vmem:[%s3 + $0x8c] sm:$0xf]
  %v393 = vld [vmem:[%s3 + $0x90] sm:$0xf]
  %v394 = vld [vmem:[%s3 + $0x94] sm:$0xf]
  %v395 = vld [vmem:[%s3 + $0x98] sm:$0xf]
  %v396 = vld [vmem:[%s3 + $0x9c] sm:$0xf]
  %v397 = vld [vmem:[%s3 + $0xa0] sm:$0xf]
  %v398 = vld [vmem:[%s3 + $0xa4] sm:$0xf]
  %v399 = vld [vmem:[%s3 + $0xa8] sm:$0xf]
  %v400 = vld [vmem:[%s3 + $0xac] sm:$0xf]
  %v401 = vld [vmem:[%s3 + $0xb0] sm:$0xf]
  %v402 = vld [vmem:[%s3 + $0xb4] sm:$0xf]
  %v403 = vld [vmem:[%s3 + $0xb8] sm:$0xf]
  %v404 = vld [vmem:[%s3 + $0xbc] sm:$0xf]
  %v405 = vld [vmem:[%s3 + $0xc0] sm:$0xf]
  %v406 = vld [vmem:[%s3 + $0xc4] sm:$0xf]
  %v407 = vld [vmem:[%s3 + $0xc8] sm:$0xf]
  %v408 = vld [vmem:[%s3 + $0xcc] sm:$0xf]
  %v409 = vld [vmem:[%s3 + $0xd0] sm:$0xf]
  %v410 = vld [vmem:[%s3 + $0xd4] sm:$0xf]
  %v411 = vld [vmem:[%s3 + $0xd8] sm:$0xf]
  %v412 = vld [vmem:[%s3 + $0xdc] sm:$0xf]
  %v413 = vld [vmem:[%s3 + $0xe0] sm:$0xf]
  %v414 = vld [vmem:[%s3 + $0xe4] sm:$0xf]
  %v415 = vld [vmem:[%s3 + $0xe8] sm:$0xf]
  %v416 = vld [vmem:[%s3 + $0xec] sm:$0xf]
  %v417 = vld [vmem:[%s3 + $0xf0] sm:$0xf]
  %v418 = vld [vmem:[%s3 + $0xf4] sm:$0xf]
  %v419 = vld [vmem:[%s3 + $0xf8] sm:$0xf]
  %v420 = vld [vmem:[%s3 + $0xfc] sm:$0xf]
  %v421 = vld [vmem:[%s3 + $0x100] sm:$0xf]
  %v422 = vld [vmem:[%s3 + $0x104] sm:$0xf]
  %v423 = vld [vmem:[%s3 + $0x108] sm:$0xf]
  %v424 = vld [vmem:[%s3 + $0x10c] sm:$0xf]
  %v425 = vld [vmem:[%s3 + $0x110] sm:$0xf]
  %v426 = vld [vmem:[%s3 + $0x114] sm:$0xf]
  %v427 = vld [vmem:[%s3 + $0x118] sm:$0xf]
  %v428 = vld [vmem:[%s3 + $0x11c] sm:$0xf]
  %v429 = vld [vmem:[%s3 + $0x120] sm:$0xf]
  %v430 = vld [vmem:[%s3 + $0x124] sm:$0xf]
  %v431 = vld [vmem:[%s3 + $0x128] sm:$0xf]
  %v432 = vld [vmem:[%s3 + $0x12c] sm:$0xf]
  %v433 = vld [vmem:[%s3 + $0x130] sm:$0xf]
  %v434 = vld [vmem:[%s3 + $0x134] sm:$0xf]
  %v435 = vld [vmem:[%s3 + $0x138] sm:$0xf]
  %v436 = vld [vmem:[%s3 + $0x13c] sm:$0xf]
  %v437 = vld [vmem:[%s3 + $0x140] sm:$0xf]
  %v438 = vld [vmem:[%s3 + $0x144] sm:$0xf]
  %v439 = vld [vmem:[%s3 + $0x148] sm:$0xf]
  %v440 = vld [vmem:[%s3 + $0x14c] sm:$0xf]
  %v441 = vld [vmem:[%s3 + $0x150] sm:$0xf]
  %v442 = vld [vmem:[%s3 + $0x154] sm:$0xf]
  %v443 = vld [vmem:[%s3 + $0x158] sm:$0xf]
  %v444 = vld [vmem:[%s3 + $0x15c] sm:$0xf]
  %v445 = vld [vmem:[%s3 + $0x160] sm:$0xf]
  %v446 = vld [vmem:[%s3 + $0x164] sm:$0xf]
  %v447 = vld [vmem:[%s3 + $0x168] sm:$0xf]
  %v448 = vld [vmem:[%s3 + $0x16c] sm:$0xf]
  %v449 = vld [vmem:[%s3 + $0x170] sm:$0xf]
  %v450 = vld [vmem:[%s3 + $0x174] sm:$0xf]
  %v451 = vld [vmem:[%s3 + $0x178] sm:$0xf]
  %v452 = vld [vmem:[%s3 + $0x17c] sm:$0xf]
  %v453 = vld [vmem:[%s3 + $0x180] sm:$0xf]
  %v454 = vld [vmem:[%s3 + $0x184] sm:$0xf]
  %v455 = vld [vmem:[%s3 + $0x188] sm:$0xf]
  %v456 = vld [vmem:[%s3 + $0x18c] sm:$0xf]
  %v457 = vld [vmem:[%s3 + $0x190] sm:$0xf]
  %v458 = vld [vmem:[%s3 + $0x194] sm:$0xf]
  %v459 = vld [vmem:[%s3 + $0x198] sm:$0xf]
  %v460 = vld [vmem:[%s3 + $0x19c] sm:$0xf]
  %v461 = vld [vmem:[%s3 + $0x1a0] sm:$0xf]
  %v462 = vld [vmem:[%s3 + $0x1a4] sm:$0xf]
  %v463 = vld [vmem:[%s3 + $0x1a8] sm:$0xf]
  %v464 = vld [vmem:[%s3 + $0x1ac] sm:$0xf]
  %v465 = vld [vmem:[%s3 + $0x1b0] sm:$0xf]
  %v466 = vld [vmem:[%s3 + $0x1b4] sm:$0xf]
  %v467 = vld [vmem:[%s3 + $0x1b8] sm:$0xf]
  %v468 = vld [vmem:[%s3 + $0x1bc] sm:$0xf]
  %v469 = vld [vmem:[%s3 + $0x1c0] sm:$0xf]
  %v470 = vld [vmem:[%s3 + $0x1c4] sm:$0xf]
  %v471 = vld [vmem:[%s3 + $0x1c8] sm:$0xf]
  %v472 = vld [vmem:[%s3 + $0x1cc] sm:$0xf]
  %v473 = vld [vmem:[%s3 + $0x1d0] sm:$0xf]
  %v474 = vld [vmem:[%s3 + $0x1d4] sm:$0xf]
  %v475 = vld [vmem:[%s3 + $0x1d8] sm:$0xf]
  %v476 = vld [vmem:[%s3 + $0x1dc] sm:$0xf]
  %v477 = vld [vmem:[%s3 + $0x1e0] sm:$0xf]
  %v478 = vld [vmem:[%s3 + $0x1e4] sm:$0xf]
  %v479 = vld [vmem:[%s3 + $0x1e8] sm:$0xf]
  %v480 = vld [vmem:[%s3 + $0x1ec] sm:$0xf]
  %v481 = vld [vmem:[%s3 + $0x1f0] sm:$0xf]
  %v482 = vld [vmem:[%s3 + $0x1f4] sm:$0xf]
  %v483 = vld [vmem:[%s3 + $0x1f8] sm:$0xf]
  %v484 = vld [vmem:[%s3 + $0x1fc] sm:$0xf]
  %v485 = vld [vmem:[%s4] sm:$0x1]
  %v487 = vlaneseq
  %v488 = vshrl.u32 %v487, 7
  %v489 = vsub.s32 0, %v488
  %v490 = vrot.slane %v485, %v489
  %v620 = vunpack.c.l.b16 %v357
  %v621 = vunpack.c.l.b16 %v358
  %v622 = vunpack.c.l.b16 %v359
  %v623 = vunpack.c.l.b16 %v360
  %v624 = vunpack.c.l.b16 %v361
  %v625 = vunpack.c.l.b16 %v362
  %v626 = vunpack.c.l.b16 %v363
  %v627 = vunpack.c.l.b16 %v364
  %v628 = vunpack.c.l.b16 %v365
  %v629 = vunpack.c.l.b16 %v366
  %v630 = vunpack.c.l.b16 %v367
  %v631 = vunpack.c.l.b16 %v368
  %v632 = vunpack.c.l.b16 %v369
  %v633 = vunpack.c.l.b16 %v370
  %v634 = vunpack.c.l.b16 %v371
  %v635 = vunpack.c.l.b16 %v372
  %v636 = vunpack.c.l.b16 %v373
  %v637 = vunpack.c.l.b16 %v374
  %v638 = vunpack.c.l.b16 %v375
  %v639 = vunpack.c.l.b16 %v376
  %v640 = vunpack.c.l.b16 %v377
  %v641 = vunpack.c.l.b16 %v378
  %v642 = vunpack.c.l.b16 %v379
  %v643 = vunpack.c.l.b16 %v380
  %v644 = vunpack.c.l.b16 %v381
  %v645 = vunpack.c.l.b16 %v382
  %v646 = vunpack.c.l.b16 %v383
  %v647 = vunpack.c.l.b16 %v384
  %v648 = vunpack.c.l.b16 %v385
  %v649 = vunpack.c.l.b16 %v386
  %v650 = vunpack.c.l.b16 %v387
  %v651 = vunpack.c.l.b16 %v388
  %v652 = vunpack.c.l.b16 %v389
  %v653 = vunpack.c.l.b16 %v390
  %v654 = vunpack.c.l.b16 %v391
  %v655 = vunpack.c.l.b16 %v392
  %v656 = vunpack.c.l.b16 %v393
  %v657 = vunpack.c.l.b16 %v394
  %v658 = vunpack.c.l.b16 %v395
  %v659 = vunpack.c.l.b16 %v396
  %v660 = vunpack.c.l.b16 %v397
  %v661 = vunpack.c.l.b16 %v398
  %v662 = vunpack.c.l.b16 %v399
  %v663 = vunpack.c.l.b16 %v400
  %v664 = vunpack.c.l.b16 %v401
  %v665 = vunpack.c.l.b16 %v402
  %v666 = vunpack.c.l.b16 %v403
  %v667 = vunpack.c.l.b16 %v404
  %v668 = vunpack.c.l.b16 %v405
  %v669 = vunpack.c.l.b16 %v406
  %v670 = vunpack.c.l.b16 %v407
  %v671 = vunpack.c.l.b16 %v408
  %v672 = vunpack.c.l.b16 %v409
  %v673 = vunpack.c.l.b16 %v410
  %v674 = vunpack.c.l.b16 %v411
  %v675 = vunpack.c.l.b16 %v412
  %v676 = vunpack.c.l.b16 %v413
  %v677 = vunpack.c.l.b16 %v414
  %v678 = vunpack.c.l.b16 %v415
  %v679 = vunpack.c.l.b16 %v416
  %v680 = vunpack.c.l.b16 %v417
  %v681 = vunpack.c.l.b16 %v418
  %v682 = vunpack.c.l.b16 %v419
  %v683 = vunpack.c.l.b16 %v420
  %v684 = vunpack.c.l.b16 %v421
  %v685 = vunpack.c.l.b16 %v422
  %v686 = vunpack.c.l.b16 %v423
  %v687 = vunpack.c.l.b16 %v424
  %v688 = vunpack.c.l.b16 %v425
  %v689 = vunpack.c.l.b16 %v426
  %v690 = vunpack.c.l.b16 %v427
  %v691 = vunpack.c.l.b16 %v428
  %v692 = vunpack.c.l.b16 %v429
  %v693 = vunpack.c.l.b16 %v430
  %v694 = vunpack.c.l.b16 %v431
  %v695 = vunpack.c.l.b16 %v432
  %v696 = vunpack.c.l.b16 %v433
  %v697 = vunpack.c.l.b16 %v434
  %v698 = vunpack.c.l.b16 %v435
  %v699 = vunpack.c.l.b16 %v436
  %v700 = vunpack.c.l.b16 %v437
  %v701 = vunpack.c.l.b16 %v438
  %v702 = vunpack.c.l.b16 %v439
  %v703 = vunpack.c.l.b16 %v440
  %v704 = vunpack.c.l.b16 %v441
  %v705 = vunpack.c.l.b16 %v442
  %v706 = vunpack.c.l.b16 %v443
  %v707 = vunpack.c.l.b16 %v444
  %v708 = vunpack.c.l.b16 %v445
  %v709 = vunpack.c.l.b16 %v446
  %v710 = vunpack.c.l.b16 %v447
  %v711 = vunpack.c.l.b16 %v448
  %v712 = vunpack.c.l.b16 %v449
  %v713 = vunpack.c.l.b16 %v450
  %v714 = vunpack.c.l.b16 %v451
  %v715 = vunpack.c.l.b16 %v452
  %v716 = vunpack.c.l.b16 %v453
  %v717 = vunpack.c.l.b16 %v454
  %v718 = vunpack.c.l.b16 %v455
  %v719 = vunpack.c.l.b16 %v456
  %v720 = vunpack.c.l.b16 %v457
  %v721 = vunpack.c.l.b16 %v458
  %v722 = vunpack.c.l.b16 %v459
  %v723 = vunpack.c.l.b16 %v460
  %v724 = vunpack.c.l.b16 %v461
  %v725 = vunpack.c.l.b16 %v462
  %v726 = vunpack.c.l.b16 %v463
  %v727 = vunpack.c.l.b16 %v464
  %v728 = vunpack.c.l.b16 %v465
  %v729 = vunpack.c.l.b16 %v466
  %v730 = vunpack.c.l.b16 %v467
  %v731 = vunpack.c.l.b16 %v468
  %v732 = vunpack.c.l.b16 %v469
  %v733 = vunpack.c.l.b16 %v470
  %v734 = vunpack.c.l.b16 %v471
  %v735 = vunpack.c.l.b16 %v472
  %v736 = vunpack.c.l.b16 %v473
  %v737 = vunpack.c.l.b16 %v474
  %v738 = vunpack.c.l.b16 %v475
  %v739 = vunpack.c.l.b16 %v476
  %v740 = vunpack.c.l.b16 %v477
  %v741 = vunpack.c.l.b16 %v478
  %v742 = vunpack.c.l.b16 %v479
  %v743 = vunpack.c.l.b16 %v480
  %v744 = vunpack.c.l.b16 %v481
  %v745 = vunpack.c.l.b16 %v482
  %v746 = vunpack.c.l.b16 %v483
  %v747 = vunpack.c.l.b16 %v484
  %v748 = vpack.c.b16 %v621, %v620
  %v749 = vpack.c.b16 %v623, %v622
  %v750 = vpack.c.b16 %v625, %v624
  %v751 = vpack.c.b16 %v627, %v626
  %v752 = vpack.c.b16 %v629, %v628
  %v753 = vpack.c.b16 %v631, %v630
  %v754 = vpack.c.b16 %v633, %v632
  %v755 = vpack.c.b16 %v635, %v634
  %v756 = vpack.c.b16 %v637, %v636
  %v757 = vpack.c.b16 %v639, %v638
  %v758 = vpack.c.b16 %v641, %v640
  %v759 = vpack.c.b16 %v643, %v642
  %v760 = vpack.c.b16 %v645, %v644
  %v761 = vpack.c.b16 %v647, %v646
  %v762 = vpack.c.b16 %v649, %v648
  %v763 = vpack.c.b16 %v651, %v650
  %v764 = vpack.c.b16 %v653, %v652
  %v765 = vpack.c.b16 %v655, %v654
  %v766 = vpack.c.b16 %v657, %v656
  %v767 = vpack.c.b16 %v659, %v658
  %v768 = vpack.c.b16 %v661, %v660
  %v769 = vpack.c.b16 %v663, %v662
  %v770 = vpack.c.b16 %v665, %v664
  %v771 = vpack.c.b16 %v667, %v666
  %v772 = vpack.c.b16 %v669, %v668
  %v773 = vpack.c.b16 %v671, %v670
  %v774 = vpack.c.b16 %v673, %v672
  %v775 = vpack.c.b16 %v675, %v674
  %v776 = vpack.c.b16 %v677, %v676
  %v777 = vpack.c.b16 %v679, %v678
  %v778 = vpack.c.b16 %v681, %v680
  %v779 = vpack.c.b16 %v683, %v682
  %v780 = vpack.c.b16 %v685, %v684
  %v781 = vpack.c.b16 %v687, %v686
  %v782 = vpack.c.b16 %v689, %v688
  %v783 = vpack.c.b16 %v691, %v690
  %v784 = vpack.c.b16 %v693, %v692
  %v785 = vpack.c.b16 %v695, %v694
  %v786 = vpack.c.b16 %v697, %v696
  %v787 = vpack.c.b16 %v699, %v698
  %v788 = vpack.c.b16 %v701, %v700
  %v789 = vpack.c.b16 %v703, %v702
  %v790 = vpack.c.b16 %v705, %v704
  %v791 = vpack.c.b16 %v707, %v706
  %v792 = vpack.c.b16 %v709, %v708
  %v793 = vpack.c.b16 %v711, %v710
  %v794 = vpack.c.b16 %v713, %v712
  %v795 = vpack.c.b16 %v715, %v714
  %v796 = vpack.c.b16 %v717, %v716
  %v797 = vpack.c.b16 %v719, %v718
  %v798 = vpack.c.b16 %v721, %v720
  %v799 = vpack.c.b16 %v723, %v722
  %v800 = vpack.c.b16 %v725, %v724
  %v801 = vpack.c.b16 %v727, %v726
  %v802 = vpack.c.b16 %v729, %v728
  %v803 = vpack.c.b16 %v731, %v730
  %v804 = vpack.c.b16 %v733, %v732
  %v805 = vpack.c.b16 %v735, %v734
  %v806 = vpack.c.b16 %v737, %v736
  %v807 = vpack.c.b16 %v739, %v738
  %v808 = vpack.c.b16 %v741, %v740
  %v809 = vpack.c.b16 %v743, %v742
  %v810 = vpack.c.b16 %v745, %v744
  %v811 = vpack.c.b16 %v747, %v746
  %876 = vmatprep.subr.bf16.mxu0 0
  %877 = vmatpush1.bf16.msra.mxu0 %v748
  %878 = vmatprep.subr.bf16.mxu0 0
  %879 = vmatpush1.bf16.msra.mxu0 %v749
  %880 = vmatprep.subr.bf16.mxu0 0
  %881 = vmatpush1.bf16.msra.mxu0 %v750
  %882 = vmatprep.subr.bf16.mxu0 0
  %883 = vmatpush1.bf16.msra.mxu0 %v751
  %884 = vmatprep.subr.bf16.mxu0 0
  %885 = vmatpush1.bf16.msra.mxu0 %v752
  %886 = vmatprep.subr.bf16.mxu0 0
  %887 = vmatpush1.bf16.msra.mxu0 %v753
  %888 = vmatprep.subr.bf16.mxu0 0
  %889 = vmatpush1.bf16.msra.mxu0 %v754
  %890 = vmatprep.subr.bf16.mxu0 0
  %891 = vmatpush1.bf16.msra.mxu0 %v755
  %892 = vmatprep.subr.bf16.mxu0 0
  %893 = vmatpush1.bf16.msra.mxu0 %v756
  %894 = vmatprep.subr.bf16.mxu0 0
  %895 = vmatpush1.bf16.msra.mxu0 %v757
  %896 = vmatprep.subr.bf16.mxu0 0
  %897 = vmatpush1.bf16.msra.mxu0 %v758
  %898 = vmatprep.subr.bf16.mxu0 0
  %899 = vmatpush1.bf16.msra.mxu0 %v759
  %900 = vmatprep.subr.bf16.mxu0 0
  %901 = vmatpush1.bf16.msra.mxu0 %v760
  %902 = vmatprep.subr.bf16.mxu0 0
  %903 = vmatpush1.bf16.msra.mxu0 %v761
  %904 = vmatprep.subr.bf16.mxu0 0
  %905 = vmatpush1.bf16.msra.mxu0 %v762
  %906 = vmatprep.subr.bf16.mxu0 0
  %907 = vmatpush1.bf16.msra.mxu0 %v763
  %908 = vmatprep.mubr.bf16.mxu0 %v350
  %909 = vmatmul.mubr.bf16.gmra.mrb[0].mxu0 %v349
  %v910 = vpop.f32.mrb[0].mxu0
  %v911 = vadd.f32 %v490, %v910
  %v912 = vpop.f32.mrb[0].mxu0
  %v913 = vpop.f32.mrb[0].mxu0
  %v914 = vpop.f32.mrb[0].mxu0
  %915 = vdwg.mxu0
  %916 = vmatprep.subr.bf16.mxu0 0
  %917 = vmatpush1.bf16.msra.mxu0 %v764
  %918 = vmatprep.subr.bf16.mxu0 0
  %919 = vmatpush1.bf16.msra.mxu0 %v765
  %920 = vmatprep.subr.bf16.mxu0 0
  %921 = vmatpush1.bf16.msra.mxu0 %v766
  %922 = vmatprep.subr.bf16.mxu0 0
  %923 = vmatpush1.bf16.msra.mxu0 %v767
  %924 = vmatprep.subr.bf16.mxu0 0
  %925 = vmatpush1.bf16.msra.mxu0 %v768
  %926 = vmatprep.subr.bf16.mxu0 0
  %927 = vmatpush1.bf16.msra.mxu0 %v769
  %928 = vmatprep.subr.bf16.mxu0 0
  %929 = vmatpush1.bf16.msra.mxu0 %v770
  %930 = vmatprep.subr.bf16.mxu0 0
  %931 = vmatpush1.bf16.msra.mxu0 %v771
  %932 = vmatprep.subr.bf16.mxu0 0
  %933 = vmatpush1.bf16.msra.mxu0 %v772
  %934 = vmatprep.subr.bf16.mxu0 0
  %935 = vmatpush1.bf16.msra.mxu0 %v773
  %936 = vmatprep.subr.bf16.mxu0 0
  %937 = vmatpush1.bf16.msra.mxu0 %v774
  %938 = vmatprep.subr.bf16.mxu0 0
  %939 = vmatpush1.bf16.msra.mxu0 %v775
  %940 = vmatprep.subr.bf16.mxu0 0
  %941 = vmatpush1.bf16.msra.mxu0 %v776
  %942 = vmatprep.subr.bf16.mxu0 0
  %943 = vmatpush1.bf16.msra.mxu0 %v777
  %944 = vmatprep.subr.bf16.mxu0 0
  %945 = vmatpush1.bf16.msra.mxu0 %v778
  %946 = vmatprep.subr.bf16.mxu0 0
  %947 = vmatpush1.bf16.msra.mxu0 %v779
  %948 = vmatprep.mubr.bf16.mxu0 %v352
  %949 = vmatmul.mubr.bf16.gmra.mrb[0].mxu0 %v351
  %v950 = vpop.f32.mrb[0].mxu0
  %v951 = vadd.f32 %v911, %v950
  %v952 = vpop.f32.mrb[0].mxu0
  %v953 = vpop.f32.mrb[0].mxu0
  %v954 = vpop.f32.mrb[0].mxu0
  %955 = vdwg.mxu0
  %956 = vmatprep.subr.bf16.mxu0 0
  %957 = vmatpush1.bf16.msra.mxu0 %v780
  %958 = vmatprep.subr.bf16.mxu0 0
  %959 = vmatpush1.bf16.msra.mxu0 %v781
  %960 = vmatprep.subr.bf16.mxu0 0
  %961 = vmatpush1.bf16.msra.mxu0 %v782
  %962 = vmatprep.subr.bf16.mxu0 0
  %963 = vmatpush1.bf16.msra.mxu0 %v783
  %964 = vmatprep.subr.bf16.mxu0 0
  %965 = vmatpush1.bf16.msra.mxu0 %v784
  %966 = vmatprep.subr.bf16.mxu0 0
  %967 = vmatpush1.bf16.msra.mxu0 %v785
  %968 = vmatprep.subr.bf16.mxu0 0
  %969 = vmatpush1.bf16.msra.mxu0 %v786
  %970 = vmatprep.subr.bf16.mxu0 0
  %971 = vmatpush1.bf16.msra.mxu0 %v787
  %972 = vmatprep.subr.bf16.mxu0 0
  %973 = vmatpush1.bf16.msra.mxu0 %v788
  %974 = vmatprep.subr.bf16.mxu0 0
  %975 = vmatpush1.bf16.msra.mxu0 %v789
  %976 = vmatprep.subr.bf16.mxu0 0
  %977 = vmatpush1.bf16.msra.mxu0 %v790
  %978 = vmatprep.subr.bf16.mxu0 0
  %979 = vmatpush1.bf16.msra.mxu0 %v791
  %980 = vmatprep.subr.bf16.mxu0 0
  %981 = vmatpush1.bf16.msra.mxu0 %v792
  %982 = vmatprep.subr.bf16.mxu0 0
  %983 = vmatpush1.bf16.msra.mxu0 %v793
  %984 = vmatprep.subr.bf16.mxu0 0
  %985 = vmatpush1.bf16.msra.mxu0 %v794
  %986 = vmatprep.subr.bf16.mxu0 0
  %987 = vmatpush1.bf16.msra.mxu0 %v795
  %988 = vmatprep.mubr.bf16.mxu0 %v354
  %989 = vmatmul.mubr.bf16.gmra.mrb[0].mxu0 %v353
  %v990 = vpop.f32.mrb[0].mxu0
  %v991 = vadd.f32 %v951, %v990
  %v992 = vpop.f32.mrb[0].mxu0
  %v993 = vpop.f32.mrb[0].mxu0
  %v994 = vpop.f32.mrb[0].mxu0
  %995 = vdwg.mxu0
  %996 = vmatprep.subr.bf16.mxu0 0
  %997 = vmatpush1.bf16.msra.mxu0 %v796
  %998 = vmatprep.subr.bf16.mxu0 0
  %999 = vmatpush1.bf16.msra.mxu0 %v797
  %1000 = vmatprep.subr.bf16.mxu0 0
  %1001 = vmatpush1.bf16.msra.mxu0 %v798
  %1002 = vmatprep.subr.bf16.mxu0 0
  %1003 = vmatpush1.bf16.msra.mxu0 %v799
  %1004 = vmatprep.subr.bf16.mxu0 0
  %1005 = vmatpush1.bf16.msra.mxu0 %v800
  %1006 = vmatprep.subr.bf16.mxu0 0
  %1007 = vmatpush1.bf16.msra.mxu0 %v801
  %1008 = vmatprep.subr.bf16.mxu0 0
  %1009 = vmatpush1.bf16.msra.mxu0 %v802
  %1010 = vmatprep.subr.bf16.mxu0 0
  %1011 = vmatpush1.bf16.msra.mxu0 %v803
  %1012 = vmatprep.subr.bf16.mxu0 0
  %1013 = vmatpush1.bf16.msra.mxu0 %v804
  %1014 = vmatprep.subr.bf16.mxu0 0
  %1015 = vmatpush1.bf16.msra.mxu0 %v805
  %1016 = vmatprep.subr.bf16.mxu0 0
  %1017 = vmatpush1.bf16.msra.mxu0 %v806
  %1018 = vmatprep.subr.bf16.mxu0 0
  %1019 = vmatpush1.bf16.msra.mxu0 %v807
  %1020 = vmatprep.subr.bf16.mxu0 0
  %1021 = vmatpush1.bf16.msra.mxu0 %v808
  %1022 = vmatprep.subr.bf16.mxu0 0
  %1023 = vmatpush1.bf16.msra.mxu0 %v809
  %1024 = vmatprep.subr.bf16.mxu0 0
  %1025 = vmatpush1.bf16.msra.mxu0 %v810
  %1026 = vmatprep.subr.bf16.mxu0 0
  %1027 = vmatpush1.bf16.msra.mxu0 %v811
  %1028 = vmatprep.mubr.bf16.mxu0 %v356
  %1029 = vmatmul.mubr.bf16.gmra.mrb[0].mxu0 %v355
  %v1030 = vpop.f32.mrb[0].mxu0
  %v1031 = vadd.f32 %v991, %v1030
  %v1032 = vpop.f32.mrb[0].mxu0
  %v1033 = vpop.f32.mrb[0].mxu0
  %v1034 = vpop.f32.mrb[0].mxu0
  %1035 = vdwg.mxu0
  %v1036 = vmax.f32 %v1031, 0.0
  %v1037 = vpack.c.bf16 %v1036, %v1036
  %v1038 = vld [vmem:[%s5] sm:$0xf]
  %v1039 = vld [vmem:[%s5 + $0x4] sm:$0xf]
  %v1040 = vld [vmem:[%s5 + $0x8] sm:$0xf]
  %v1041 = vld [vmem:[%s5 + $0xc] sm:$0xf]
  %v1042 = vld [vmem:[%s5 + $0x10] sm:$0xf]
  %v1043 = vld [vmem:[%s5 + $0x14] sm:$0xf]
  %v1044 = vld [vmem:[%s5 + $0x18] sm:$0xf]
  %v1045 = vld [vmem:[%s5 + $0x1c] sm:$0xf]
  %v1046 = vld [vmem:[%s6] sm:$0x1]
  %v1048 = vlaneseq
  %v1049 = vshrl.u32 %v1048, 7
  %v1050 = vsub.s32 0, %v1049
  %v1051 = vrot.slane %v1046, %v1050
  %v1061 = vunpack.c.l.b16 %v1038
  %v1062 = vunpack.c.l.b16 %v1039
  %v1063 = vunpack.c.l.b16 %v1040
  %v1064 = vunpack.c.l.b16 %v1041
  %v1065 = vunpack.c.l.b16 %v1042
  %v1066 = vunpack.c.l.b16 %v1043
  %v1067 = vunpack.c.l.b16 %v1044
  %v1068 = vunpack.c.l.b16 %v1045
  %v1069 = vpack.c.b16 %v1062, %v1061
  %v1070 = vpack.c.b16 %v1064, %v1063
  %v1071 = vpack.c.b16 %v1066, %v1065
  %v1072 = vpack.c.b16 %v1068, %v1067
  %vm1077 = vcmask 523264
  %v1079 = vsel %vm1077, %v1037, 0
  %1081 = vmatprep.subr.bf16.mxu0 0
  %1082 = vmatpush1.bf16.msra.mxu0 %v1069
  %1083 = vmatprep.subr.bf16.mxu0 0
  %1084 = vmatpush1.bf16.msra.mxu0 %v1070
  %1085 = vmatprep.subr.bf16.mxu0 0
  %1086 = vmatpush1.bf16.msra.mxu0 %v1071
  %1087 = vmatprep.subr.bf16.mxu0 0
  %1088 = vmatpush1.bf16.msra.mxu0 %v1072
  %1089 = vmatprep.subr.bf16.mxu0 0
  %1090 = vmatpush1.bf16.msra.mxu0 0
  %1091 = vmatprep.subr.bf16.mxu0 0
  %1092 = vmatpush1.bf16.msra.mxu0 0
  %1093 = vmatprep.subr.bf16.mxu0 0
  %1094 = vmatpush1.bf16.msra.mxu0 0
  %1095 = vmatprep.subr.bf16.mxu0 0
  %1096 = vmatpush1.bf16.msra.mxu0 0
  %1097 = vmatprep.subr.bf16.mxu0 0
  %1098 = vmatpush1.bf16.msra.mxu0 0
  %1099 = vmatprep.subr.bf16.mxu0 0
  %1100 = vmatpush1.bf16.msra.mxu0 0
  %1101 = vmatprep.subr.bf16.mxu0 0
  %1102 = vmatpush1.bf16.msra.mxu0 0
  %1103 = vmatprep.subr.bf16.mxu0 0
  %1104 = vmatpush1.bf16.msra.mxu0 0
  %1105 = vmatprep.subr.bf16.mxu0 0
  %1106 = vmatpush1.bf16.msra.mxu0 0
  %1107 = vmatprep.subr.bf16.mxu0 0
  %1108 = vmatpush1.bf16.msra.mxu0 0
  %1109 = vmatprep.subr.bf16.mxu0 0
  %1110 = vmatpush1.bf16.msra.mxu0 0
  %1111 = vmatprep.subr.bf16.mxu0 0
  %1112 = vmatpush1.bf16.msra.mxu0 0
  %1113 = vmatprep.mubr.bf16.mxu0 0
  %1114 = vmatmul.mubr.bf16.gmra.mrb[0].mxu0 %v1079
  %v1115 = vpop.f32.mrb[0].mxu0
  %v1116 = vadd.f32 %v1051, %v1115
  %v1117 = vpop.f32.mrb[0].mxu0
  %v1118 = vpop.f32.mrb[0].mxu0
  %v1119 = vpop.f32.mrb[0].mxu0
  %1120 = vdwg.mxu0
  %v1121 = vmax.f32 %v1116, 0.0
  %v1122 = vpack.c.bf16 %v1121, %v1121
  %v1123 = vld [vmem:[%s7] sm:$0xff]
  %v1124 = vld [vmem:[%s7 + $0x8] sm:$0xff]
  %v1125 = vld [vmem:[%s7 + $0x10] sm:$0xff]
  %v1126 = vld [vmem:[%s7 + $0x18] sm:$0xff]
  %v1127 = vld [vmem:[%s7 + $0x20] sm:$0xff]
  %v1128 = vld [vmem:[%s7 + $0x28] sm:$0xff]
  %v1129 = vld [vmem:[%s7 + $0x30] sm:$0xff]
  %v1130 = vld [vmem:[%s7 + $0x38] sm:$0xff]
  %v1131 = vld [vmem:[%s7 + $0x40] sm:$0xff]
  %v1132 = vld [vmem:[%s7 + $0x48] sm:$0xff]
  %v1133 = vld [vmem:[%s7 + $0x50] sm:$0xff]
  %v1134 = vld [vmem:[%s7 + $0x58] sm:$0xff]
  %v1135 = vld [vmem:[%s7 + $0x60] sm:$0xff]
  %v1136 = vld [vmem:[%s7 + $0x68] sm:$0xff]
  %v1137 = vld [vmem:[%s7 + $0x70] sm:$0xff]
  %v1138 = vld [vmem:[%s7 + $0x78] sm:$0xff]
  %v1139 = vld [vmem:[%s8] sm:$0x3]
  %v1141 = vlaneseq
  %v1142 = vshrl.u32 %v1141, 7
  %v1143 = vsub.s32 0, %v1142
  %v1144 = vrot.slane %v1139, %v1143
  %v1145 = vlaneseq
  %v1146 = vshrl.u32 %v1145, 7
  %v1147 = vsub.s32 1, %v1146
  %v1148 = vrot.slane %v1139, %v1147
  %v1167 = vunpack.c.l.b16 %v1123
  %v1168 = vunpack.c.h.b16 %v1123
  %v1169 = vunpack.c.l.b16 %v1124
  %v1170 = vunpack.c.h.b16 %v1124
  %v1171 = vunpack.c.l.b16 %v1125
  %v1172 = vunpack.c.h.b16 %v1125
  %v1173 = vunpack.c.l.b16 %v1126
  %v1174 = vunpack.c.h.b16 %v1126
  %v1175 = vunpack.c.l.b16 %v1127
  %v1176 = vunpack.c.h.b16 %v1127
  %v1177 = vunpack.c.l.b16 %v1128
  %v1178 = vunpack.c.h.b16 %v1128
  %v1179 = vunpack.c.l.b16 %v1129
  %v1180 = vunpack.c.h.b16 %v1129
  %v1181 = vunpack.c.l.b16 %v1130
  %v1182 = vunpack.c.h.b16 %v1130
  %v1183 = vunpack.c.l.b16 %v1131
  %v1184 = vunpack.c.h.b16 %v1131
  %v1185 = vunpack.c.l.b16 %v1132
  %v1186 = vunpack.c.h.b16 %v1132
  %v1187 = vunpack.c.l.b16 %v1133
  %v1188 = vunpack.c.h.b16 %v1133
  %v1189 = vunpack.c.l.b16 %v1134
  %v1190 = vunpack.c.h.b16 %v1134
  %v1191 = vunpack.c.l.b16 %v1135
  %v1192 = vunpack.c.h.b16 %v1135
  %v1193 = vunpack.c.l.b16 %v1136
  %v1194 = vunpack.c.h.b16 %v1136
  %v1195 = vunpack.c.l.b16 %v1137
  %v1196 = vunpack.c.h.b16 %v1137
  %v1197 = vunpack.c.l.b16 %v1138
  %v1198 = vunpack.c.h.b16 %v1138
  %v1199 = vpack.c.b16 %v1169, %v1167
  %v1200 = vpack.c.b16 %v1170, %v1168
  %v1201 = vpack.c.b16 %v1173, %v1171
  %v1202 = vpack.c.b16 %v1174, %v1172
  %v1203 = vpack.c.b16 %v1177, %v1175
  %v1204 = vpack.c.b16 %v1178, %v1176
  %v1205 = vpack.c.b16 %v1181, %v1179
  %v1206 = vpack.c.b16 %v1182, %v1180
  %v1207 = vpack.c.b16 %v1185, %v1183
  %v1208 = vpack.c.b16 %v1186, %v1184
  %v1209 = vpack.c.b16 %v1189, %v1187
  %v1210 = vpack.c.b16 %v1190, %v1188
  %v1211 = vpack.c.b16 %v1193, %v1191
  %v1212 = vpack.c.b16 %v1194, %v1192
  %v1213 = vpack.c.b16 %v1197, %v1195
  %v1214 = vpack.c.b16 %v1198, %v1196
  %1231 = vmatprep.subr.bf16.mxu0 %v1200
  %1232 = vmatpush1.bf16.msra.mxu0 %v1199
  %1233 = vmatprep.subr.bf16.mxu0 %v1202
  %1234 = vmatpush1.bf16.msra.mxu0 %v1201
  %1235 = vmatprep.subr.bf16.mxu0 %v1204
  %1236 = vmatpush1.bf16.msra.mxu0 %v1203
  %1237 = vmatprep.subr.bf16.mxu0 %v1206
  %1238 = vmatpush1.bf16.msra.mxu0 %v1205
  %1239 = vmatprep.subr.bf16.mxu0 %v1208
  %1240 = vmatpush1.bf16.msra.mxu0 %v1207
  %1241 = vmatprep.subr.bf16.mxu0 %v1210
  %1242 = vmatpush1.bf16.msra.mxu0 %v1209
  %1243 = vmatprep.subr.bf16.mxu0 %v1212
  %1244 = vmatpush1.bf16.msra.mxu0 %v1211
  %1245 = vmatprep.subr.bf16.mxu0 %v1214
  %1246 = vmatpush1.bf16.msra.mxu0 %v1213
  %1247 = vmatprep.subr.bf16.mxu0 0
  %1248 = vmatpush1.bf16.msra.mxu0 0
  %1249 = vmatprep.subr.bf16.mxu0 0
  %1250 = vmatpush1.bf16.msra.mxu0 0
  %1251 = vmatprep.subr.bf16.mxu0 0
  %1252 = vmatpush1.bf16.msra.mxu0 0
  %1253 = vmatprep.subr.bf16.mxu0 0
  %1254 = vmatpush1.bf16.msra.mxu0 0
  %1255 = vmatprep.subr.bf16.mxu0 0
  %1256 = vmatpush1.bf16.msra.mxu0 0
  %1257 = vmatprep.subr.bf16.mxu0 0
  %1258 = vmatpush1.bf16.msra.mxu0 0
  %1259 = vmatprep.subr.bf16.mxu0 0
  %1260 = vmatpush1.bf16.msra.mxu0 0
  %1261 = vmatprep.subr.bf16.mxu0 0
  %1262 = vmatpush1.bf16.msra.mxu0 0
  %1263 = vmatprep.mubr.bf16.mxu0 0
  %1264 = vmatmul.mubr.bf16.gmra.mrb[0].mxu0 %v1122
  %v1265 = vpop.f32.mrb[0].mxu0
  %v1266 = vadd.f32 %v1144, %v1265
  %v1267 = vpop.f32.mrb[0].mxu0
  %v1268 = vadd.f32 %v1148, %v1267
  %v1269 = vpop.f32.mrb[0].mxu0
  %v1270 = vpop.f32.mrb[0].mxu0
  %1271 = vdwg.mxu0
  %1272 = vst [vmem:[%s9] sm:$0xff] %v1266
  %1273 = vst [vmem:[%s9 + $0x8] sm:$0xff] %v1268
  // Predicated region
  $region38: #{dense_decoder_forward.1} parent=0 // pred_check
    _
  $region39: #{dense_decoder_forward.1} parent=0 // pred_check_branch
    %1275 = sbr.rel (0) target = $region41
  $region40: #{dense_decoder_forward.1} parent=0 // pred_region
    _
  $region41: #{dense_decoder_forward.1} parent=0 // pred_fallthru
    _
  // Predicated region
  $region42: #{dense_decoder_forward.1} parent=0 // pred_check
    _
  $region43: #{dense_decoder_forward.1} parent=0 // pred_check_branch
    %1277 = sbr.rel (0) target = $region45
  $region44: #{dense_decoder_forward.1} parent=0 // pred_region
    _
  $region45: #{dense_decoder_forward.1} parent=0 // pred_fallthru
    _

</llo_original>
